<compile_context>
chip_gen: v5e
topology: v5e:2x2
jax: 0.10.0
libtpu: 0.0.40
codegen_flags: <defaults>
</compile_context>

<pallas_src>
import functools
import itertools as it
import random

import numpy as np
import jax
import jax.numpy as jnp
from jax import lax
from jax.experimental import pallas as pl
from jax.experimental.pallas import tpu as pltpu


# ----------------------------------------------------------------------------
# Host-side random triplet sampling (faithful port of TupleSampler.randomsampling)
# ----------------------------------------------------------------------------
def random_triplet_sampling(batch_size, labels, seed=0):
    labels = np.asarray(labels)
    rng = random.Random(seed)
    unique_classes = np.unique(labels)
    indices = np.arange(batch_size)
    class_dict = {i: indices[labels == i] for i in unique_classes}
    sampled_triplets = [
        list(it.product([x], [x], [y for y in unique_classes if x != y]))
        for x in unique_classes
    ]
    sampled_triplets = [x for y in sampled_triplets for x in y]
    sampled_triplets = [
        [t for t in list(it.product(*[class_dict[j] for j in trip])) if t[0] != t[1]]
        for trip in sampled_triplets
    ]
    sampled_triplets = [x for y in sampled_triplets for x in y]
    sampled_triplets = rng.sample(sampled_triplets, batch_size)
    return np.asarray(sampled_triplets, dtype=np.int32)  # (BS, 3)


# ----------------------------------------------------------------------------
# Pallas kernel: vectorized hinge over the k (padded to 8) contributing triplets
# ----------------------------------------------------------------------------
def _triplet_loss_kernel(apn_ref, out_ref, *, margin, k, k_pad):
    # apn_ref: (3*k_pad, D) in VMEM -- rows [0:8]=anchors, [8:16]=positives,
    #          [16:24]=negatives (each group padded to 8 sublanes with row 0).
    # out_ref: (1, 1) f32 in SMEM   -- scalar loss.
    a = apn_ref[0 * k_pad:1 * k_pad, :].astype(jnp.float32)   # (k_pad, D)
    p = apn_ref[1 * k_pad:2 * k_pad, :].astype(jnp.float32)   # (k_pad, D)
    n = apn_ref[2 * k_pad:3 * k_pad, :].astype(jnp.float32)   # (k_pad, D)

    # ||a-p||^2 - ||a-n||^2 == sum((n - p) * (2a - p - n)) : one multiply + one
    # lane reduction per triplet instead of two squares + two reductions.
    diff = jnp.sum((n - p) * (2.0 * a - p - n), axis=-1, keepdims=True)  # (k_pad, 1)
    hinge = jnp.maximum(diff + jnp.float32(margin), jnp.float32(0.0))

    # Zero out the padded rows (they replicate triplet 0), then mean over k.
    row = lax.broadcasted_iota(jnp.int32, (k_pad, 1), 0)
    masked = jnp.where(row < k, hinge, jnp.float32(0.0))
    out_ref[0, 0] = jnp.sum(masked) * jnp.float32(1.0 / k)


def triplet_loss_pallas(batch, triplets, margin=1.0):
    """batch: (BS, D) jnp array. triplets: (T, 3) int numpy array of batch indices."""
    triplets = np.asarray(triplets, dtype=np.int32)
    T = triplets.shape[0]
    # Only the first 4 triplets contribute to torch.mean(loss[0:4]).
    k = min(4, T)
    k_pad = 8  # sublane-friendly padding; padded rows are masked in-kernel.
    D = batch.shape[-1]

    idx = triplets[:k]  # (k, 3), static numpy at trace time.
    pad = np.zeros(k_pad - k, dtype=np.int32)  # pad each group with row index 0
    gather_idx = np.concatenate(
        [idx[:, 0], pad, idx[:, 1], pad, idx[:, 2], pad]
    )  # (3*k_pad,)

    # Single static gather of the <=12 contributing rows (plus padding) in the
    # wrapper; the kernel never sees the full batch.
    apn = jnp.take(batch, jnp.asarray(gather_idx), axis=0)  # (3*k_pad, D)

    kernel = functools.partial(
        _triplet_loss_kernel, margin=float(margin), k=k, k_pad=k_pad
    )
    itemsize = np.dtype(batch.dtype).itemsize
    out = pl.pallas_call(
        kernel,
        out_shape=jax.ShapeDtypeStruct((1, 1), jnp.float32),
        in_specs=[pl.BlockSpec(memory_space=pltpu.MemorySpace.VMEM)],
        out_specs=pl.BlockSpec(memory_space=pltpu.MemorySpace.SMEM),
        cost_estimate=pl.CostEstimate(
            flops=6 * k_pad * D,
            transcendentals=0,
            bytes_accessed=3 * k_pad * D * itemsize + 4,
        ),
    )(apn)
    return out[0, 0]


# ----------------------------------------------------------------------------
# Pure-JAX reference for sanity checking (mirrors the torch module exactly)
# ----------------------------------------------------------------------------
def triplet_loss_ref(batch, triplets, margin=1.0):
    triplets = np.asarray(triplets)
    a = batch[triplets[:, 0]]
    p = batch[triplets[:, 1]]
    n = batch[triplets[:, 2]]
    dp = jnp.sum((a - p) ** 2, axis=-1)
    dn = jnp.sum((a - n) ** 2, axis=-1)
    loss = jnp.maximum(dp - dn + margin, 0.0)
    return jnp.mean(loss[0:4])


if __name__ == "__main__":
    BS, D = 8, 32
    MARGIN = 1.0

    key = jax.random.PRNGKey(0)
    batch = jax.random.normal(key, (BS, D), dtype=jnp.float32)
    labels = np.array([0, 0, 1, 1, 2, 2, 3, 3], dtype=np.int32)

    # Deterministic 'random' triplet sampling (host-side glue, seeded).
    # TODO(synk): 'semihard' / 'distance' / 'npair' sampling variants are
    # host-side torch/numpy control flow and are not ported.
    triplets = random_triplet_sampling(BS, labels, seed=0)

    out = triplet_loss_pallas(batch, triplets, margin=MARGIN)
    out = jax.block_until_ready(out)

    ref = triplet_loss_ref(batch, triplets, margin=MARGIN)
    # Slightly looser tolerance: the kernel uses the algebraically-rewritten
    # hinge argument (single fused reduction), which rounds differently from
    # the two-square reference.
    np.testing.assert_allclose(np.asarray(out), np.asarray(ref), rtol=1e-4, atol=1e-4)

    print("KERNEL_OK")
</pallas_src>

<mosaic_0001>
module attributes {stable_mosaic.version = 11 : i64} {
  func.func @_triplet_loss_kernel(%arg0: memref<24x32xf32, #tpu.memory_space<vmem>>, %arg1: memref<1x1xf32, #tpu.memory_space<smem>>) attributes {dimension_semantics = [], scalar_prefetch = 0 : i64, scratch_operands = 0 : i64, tpu.core_type = #tpu.core_type<tc>} {
    %c0 = arith.constant 0 : index
    %c0_0 = arith.constant 0 : index
    %0 = vector.load %arg0[%c0, %c0_0] : memref<24x32xf32, #tpu.memory_space<vmem>>, vector<8x32xf32>
    %c8 = arith.constant 8 : index
    %c0_1 = arith.constant 0 : index
    %1 = vector.load %arg0[%c8, %c0_1] : memref<24x32xf32, #tpu.memory_space<vmem>>, vector<8x32xf32>
    %c16 = arith.constant 16 : index
    %c0_2 = arith.constant 0 : index
    %2 = vector.load %arg0[%c16, %c0_2] : memref<24x32xf32, #tpu.memory_space<vmem>>, vector<8x32xf32>
    %3 = arith.subf %2, %1 : vector<8x32xf32>
    %cst = arith.constant 2.000000e+00 : f32
    %4 = vector.broadcast %cst : f32 to vector<8x32xf32>
    %5 = arith.mulf %4, %0 : vector<8x32xf32>
    %6 = arith.subf %5, %1 : vector<8x32xf32>
    %7 = arith.subf %6, %2 : vector<8x32xf32>
    %8 = arith.mulf %3, %7 : vector<8x32xf32>
    %cst_3 = arith.constant dense<0.000000e+00> : vector<8xf32>
    %9 = vector.multi_reduction <add>, %8, %cst_3 [1] : vector<8x32xf32> to vector<8xf32>
    %10 = vector.shape_cast %9 : vector<8xf32> to vector<8x1xf32>
    %cst_4 = arith.constant 1.000000e+00 : f32
    %11 = vector.broadcast %cst_4 : f32 to vector<8x1xf32>
    %12 = arith.addf %10, %11 : vector<8x1xf32>
    %cst_5 = arith.constant 0.000000e+00 : f32
    %13 = vector.broadcast %cst_5 : f32 to vector<8x1xf32>
    %14 = arith.maximumf %12, %13 : vector<8x1xf32>
    %15 = tpu.iota {dimensions = array<i32: 0>} : vector<8x1xi32>
    %c4_i32 = arith.constant 4 : i32
    %16 = vector.broadcast %c4_i32 : i32 to vector<8x1xi32>
    %17 = arith.cmpi slt, %15, %16 : vector<8x1xi32>
    %cst_6 = arith.constant 0.000000e+00 : f32
    %18 = vector.broadcast %cst_6 : f32 to vector<8x1xf32>
    %19 = arith.select %17, %14, %18 : vector<8x1xi1>, vector<8x1xf32>
    %20 = vector.shape_cast %19 : vector<8x1xf32> to vector<1x8x1xf32>
    %cst_7 = arith.constant dense<0.000000e+00> : vector<1xf32>
    %21 = vector.multi_reduction <add>, %20, %cst_7 [1, 2] : vector<1x8x1xf32> to vector<1xf32>
    %22 = vector.shape_cast %21 : vector<1xf32> to vector<1x1x1xf32>
    %23 = vector.extract %22[0, 0, 0] : f32 from vector<1x1x1xf32>
    %cst_8 = arith.constant 2.500000e-01 : f32
    %24 = arith.mulf %23, %cst_8 : f32
    %c0_9 = arith.constant 0 : index
    %c0_10 = arith.constant 0 : index
    %25 = memref.load %arg1[%c0_9, %c0_10] : memref<1x1xf32, #tpu.memory_space<smem>>
    memref.store %24, %arg1[%c0_9, %c0_10] : memref<1x1xf32, #tpu.memory_space<smem>>
    return
  }
}

</mosaic_0001>

<llo_original>
// kernel: tpu_custom_call.1
$region0: #{tpu_custom_call.1}
  #allocation0 [shape = 'u32[]', space=smem, size = 0x4, offset = 0x4, fixed_abs, tag = 'smem constant byte address 0x4 - core index']
  #allocation1 [shape = 'u32[72,128]{1,0:T(1,128)}', space=vmem, size = 0x9000, scoped, tag = 'internal scratch']
  %s0 = inlined_call_operand.hbm [shape: f32[24,32], index: 0, kind: input, shape index: {}]
  %s1 = inlined_call_operand.hbm [shape: f32[1,1], index: 1, kind: output, shape index: {}]
  %s2 = sld [smem:[#allocation0]]
  $region18: #{tpu_custom_call.1} parent=0
    _
  %s4 = ssub.s32 1, %s2
  %s5 = scalar_select 0, %s4, %s2
  $region1: #{tpu_custom_call.1} parent=0
    #allocation2 [shape = 'u8[12288]{0}', space=vmem, size = 0x3000, scoped, tag = 'input window, operand 0, single buffered']
    #allocation3 [shape = 's32[1]{0}', space=sflag, size = 0x4, scoped, tag = 'scoped memory for tpu_custom_call.1']
    #allocation4 [shape = 's32[1]{0}', space=sflag, size = 0x4, scoped, tag = 'scoped memory for tpu_custom_call.1']
    #allocation5 [shape = 'u8[512]{0}', space=smem, size = 0x200, scoped, tag = 'output window, operand 0, single buffered']
    %6 = vsyncpa [#allocation3], 0
    %7 = vsyncpa [#allocation4], 0
    // Predicated region
    $region2: #{tpu_custom_call.1} parent=1 // pred_check
      _
    $region3: #{tpu_custom_call.1} parent=1 // pred_check_branch
      %9 = sbr.rel (0) target = $region5
    $region4: #{tpu_custom_call.1} parent=1 // pred_region
      %11 = vsyncadd [#allocation3], 0
      %s12 = sshll.u32 %s0, 4
      %s13 = int_to_ptr.hbm [resolvable:$true] %s12
      %s14 = sshll.u32 [#allocation2], 4
      %s15 = int_to_ptr.vmem [resolvable:$true] %s14
      %20 = dma.hbm_to_vmem [thread:$0]  %s13, 384, %s15, [#allocation3], 128, 128, 8
    $region5: #{tpu_custom_call.1} parent=1 // pred_fallthru
      _
    // Predicated region
    $region6: #{tpu_custom_call.1} parent=1 // pred_check
      _
    $region7: #{tpu_custom_call.1} parent=1 // pred_check_branch
      %22 = sbr.rel (0) target = $region9
    $region8: #{tpu_custom_call.1} parent=1 // pred_region
      %24 = dma.done [#allocation3], 384
    $region9: #{tpu_custom_call.1} parent=1 // pred_fallthru
      _
    %v25 = vld [vmem:[#allocation2] sm:$0xff]
    %v26 = vld [vmem:[#allocation2 + $0x8] sm:$0xff]
    %v27 = vld [vmem:[#allocation2 + $0x10] sm:$0xff]
    %v28 = vsub.f32 %v27, %v26
    %v29 = vmul.f32 %v25, 2.0
    %v30 = vsub.f32 %v29, %v26
    %v31 = vsub.f32 %v30, %v27
    %v32 = vmul.f32 %v28, %v31
    %vm33 = vcmask 261120
    %v34 = vsel %vm33, %v32, 0.0
    %35 = vadd.xlane.f32.xlu0 %v34
    %v36 = vpop.xlane.xlu0 %35
    %v37 = vadd.f32 %v36, 1.0
    %v38 = vmax.f32 %v37, 0.0
    %v39 = vlaneseq
    %v40 = vshrl.u32 %v39, 7
    %vm41 = vcmp.lt.s32.totalorder %v40, 4
    %v42 = vsel %vm41, %v38, 0.0
    %vm43 = vcmask 7168
    %v44 = vsel %vm43, %v42, 0.0
    %45 = vadd.xlane.f32.xlu0 %v44
    %v46 = vpop.xlane.xlu0 %45
    %v47 = vrot.slane %v46, 4
    %v48 = vadd.f32 %v46, %v47
    %v49 = vrot.slane %v48, 2
    %v50 = vadd.f32 %v48, %v49
    %v51 = vrot.slane %v50, 1
    %v52 = vadd.f32 %v50, %v51
    %s53 = vtos %v52
    %s54 = smul.f32 %s53, 0.25
    %s55 = scalar_lea.smem [#allocation5], 0
    %56 = sst [smem:[%s55]] %s54
    // Predicated region
    $region10: #{tpu_custom_call.1} parent=1 // pred_check
      _
    $region11: #{tpu_custom_call.1} parent=1 // pred_check_branch
      %58 = sbr.rel (0) target = $region13
    $region12: #{tpu_custom_call.1} parent=1 // pred_region
      %60 = vsyncadd [#allocation4], 0
      %s62 = sshll.u32 %s1, 4
      %s63 = int_to_ptr.hbm [resolvable:$true] %s62
      %65 = dma.smem_to_hbm [#allocation5], 16, %s63, [#allocation4]
    $region13: #{tpu_custom_call.1} parent=1 // pred_fallthru
      _
    // Predicated region
    $region14: #{tpu_custom_call.1} parent=1 // pred_check
      _
    $region15: #{tpu_custom_call.1} parent=1 // pred_check_branch
      %67 = sbr.rel (0) target = $region17
    $region16: #{tpu_custom_call.1} parent=1 // pred_region
      %69 = dma.done [#allocation4], 16
    $region17: #{tpu_custom_call.1} parent=1 // pred_fallthru
      _
    %70 = sfence
    %71 = vsyncpa [#allocation3], 1
    %72 = vsyncpa [#allocation4], 1

</llo_original>
